<compile_context>
chip_gen: v5e
topology: v5e:2x2
jax: 0.10.0
libtpu: 0.0.40
codegen_flags: <defaults>
</compile_context>

<pallas_src>
import functools
import math

import jax
import jax.numpy as jnp
from jax.experimental import pallas as pl
from jax.experimental.pallas import tpu as pltpu


def _round_up(x, m):
    return (x + m - 1) // m * m


# ----------------------------------------------------------------------------
# Fused kernel
# ----------------------------------------------------------------------------
def _shift_rows_down(a):
    """s[0] = 0, s[t] = a[t-1].  `a` is a 2D value living in vregs."""
    if a.shape[0] == 1:
        return jnp.zeros_like(a)
    zero_row = jnp.zeros((1, a.shape[1]), dtype=a.dtype)
    return jnp.concatenate([zero_row, a[:-1, :]], axis=0)


def _subsampler_fused_kernel(x4_ref, w1e_ref, w1p_ref, w1o_ref, b1_ref,
                             w2m_ref, w2c_ref, w2p_ref, b2_ref, wp_ref,
                             o_ref, *, t1_len):
    """One batch element: x4 (1, T2, 4*Cin) -> out (1, T2, Np).

    conv1 output (length T1) is computed deinterleaved as h_even[t]=conv1[2t],
    h_odd[t]=conv1[2t+1]; conv2 then only needs whole-row matmuls and a 1-row shift.
    """
    f32 = jnp.float32
    x4 = x4_ref[0]                                  # (T2, 4*Cin) bf16
    x4_prev = _shift_rows_down(x4)                  # row t -> x4[t-1], row 0 -> 0 (left pad)

    b1 = b1_ref[...]                                # (1, C) f32
    # conv1, even output rows:  W1@x[4t] + W2@x[4t+1] + W0@x[4t-1]
    h_even = jnp.dot(x4, w1e_ref[...], preferred_element_type=f32)
    h_even = h_even + jnp.dot(x4_prev, w1p_ref[...], preferred_element_type=f32)
    h_even = jnp.maximum(h_even + b1, 0.0)          # (T2, C) f32
    # conv1, odd output rows:   W0@x[4t+1] + W1@x[4t+2] + W2@x[4t+3]
    h_odd = jnp.dot(x4, w1o_ref[...], preferred_element_type=f32)
    h_odd = jnp.maximum(h_odd + b1, 0.0)            # (T2, C) f32

    t2 = x4.shape[0]
    if 2 * t2 - 1 >= t1_len:
        # T1 is odd: the last odd row lies in conv2's zero-padding region -> zero it.
        rows = jax.lax.broadcasted_iota(jnp.int32, h_odd.shape, 0)
        h_odd = jnp.where(2 * rows + 1 < t1_len, h_odd, 0.0)

    h_even_b = h_even.astype(jnp.bfloat16)
    h_odd_b = h_odd.astype(jnp.bfloat16)
    h_m1_b = _shift_rows_down(h_odd_b)              # h1[2t-1] = h_odd[t-1], left pad = 0

    # conv2:  V0@h1[2t-1] + V1@h1[2t] + V2@h1[2t+1]
    h2 = jnp.dot(h_m1_b, w2m_ref[...], preferred_element_type=f32)
    h2 = h2 + jnp.dot(h_even_b, w2c_ref[...], preferred_element_type=f32)
    h2 = h2 + jnp.dot(h_odd_b, w2p_ref[...], preferred_element_type=f32)
    h2 = jnp.maximum(h2 + b2_ref[...], 0.0).astype(jnp.bfloat16)   # (T2, C)

    # projection (no bias), N padded to a multiple of 128 -> lane-dense store
    out = jnp.dot(h2, wp_ref[...], preferred_element_type=f32)     # (T2, Np)
    o_ref[0] = out.astype(o_ref.dtype)


# ----------------------------------------------------------------------------
# Wrapper: layout plumbing (free reshapes / tiny weight reshuffles) + pallas_call
# ----------------------------------------------------------------------------
def conv_subsampler_forward(x, lengths, params, subsampling_factor=4):
    """x: (B, T, dim_in) f32, lengths: (B,) int32 or None -> ((B, T2, dim), lengths/4)."""
    convs = params["convs"]
    assert len(convs) == 2, "fused kernel is specialized for subsampling_factor=4"
    (w1, b1), (w2, b2) = convs                      # w: (C_out, C_in, 3) PyTorch layout
    wp = params["proj"]                             # (num_channels, dim) = Linear weight^T

    B, T, cin = x.shape
    C = w1.shape[0]
    dim = wp.shape[1]
    t1 = (T - 1) // 2 + 1                           # conv1 output length
    t2 = (t1 - 1) // 2 + 1                          # conv2 output length
    t_pad = 4 * t2
    n_pad = _round_up(dim, 128)

    # ---- input: cast to bf16, pad time to 4*t2, free reshape to (B, t2, 4*cin) ----
    xb = x.astype(jnp.bfloat16)
    if t_pad != T:
        xb = jnp.pad(xb, ((0, 0), (0, t_pad - T), (0, 0)))
    x4 = xb.reshape(B, t2, 4 * cin)

    # ---- conv1 weights as (4*cin, C) matrices (taps folded into K) ----
    wt1 = jnp.transpose(w1, (2, 1, 0))              # (3, cin, C): wt1[k, ci, co]
    zer = jnp.zeros((cin, C), w1.dtype)
    w1_even = jnp.concatenate([wt1[1], wt1[2], zer, zer], axis=0)   # taps on x[4t], x[4t+1]
    w1_prev = jnp.concatenate([zer, zer, zer, wt1[0]], axis=0)      # tap on  x[4t-1]
    w1_odd = jnp.concatenate([zer, wt1[0], wt1[1], wt1[2]], axis=0) # taps on x[4t+1..4t+3]

    # ---- conv2 weights as (C, C) per tap ----
    wt2 = jnp.transpose(w2, (2, 1, 0))              # (3, C, C)
    w2_m1, w2_c, w2_p1 = wt2[0], wt2[1], wt2[2]

    # ---- projection weight, N padded to multiple of 128 for a lane-dense store ----
    wp_p = jnp.pad(wp, ((0, 0), (0, n_pad - dim))) if n_pad != dim else wp

    bf16 = jnp.bfloat16
    w1_even_b, w1_prev_b, w1_odd_b = (w1_even.astype(bf16), w1_prev.astype(bf16),
                                      w1_odd.astype(bf16))
    w2_m1_b, w2_c_b, w2_p1_b = w2_m1.astype(bf16), w2_c.astype(bf16), w2_p1.astype(bf16)
    wp_b = wp_p.astype(bf16)
    b1_2d = b1.reshape(1, C).astype(jnp.float32)
    b2_2d = b2.reshape(1, C).astype(jnp.float32)

    flops = 2 * B * t2 * (3 * (4 * cin) * C + 3 * C * C + C * n_pad)
    bytes_accessed = (B * t2 * 4 * cin * 2
                      + (3 * 4 * cin * C + 3 * C * C + C * n_pad) * 2
                      + 2 * C * 4
                      + B * t2 * n_pad * 4)

    kernel = functools.partial(_subsampler_fused_kernel, t1_len=t1)
    wspec = lambda shape: pl.BlockSpec(shape, lambda bidx: (0, 0))

    out_full = pl.pallas_call(
        kernel,
        out_shape=jax.ShapeDtypeStruct((B, t2, n_pad), jnp.float32),
        grid=(B,),
        in_specs=[
            pl.BlockSpec((1, t2, 4 * cin), lambda bidx: (bidx, 0, 0)),   # x4 (streamed)
            wspec((4 * cin, C)),                                         # w1_even
            wspec((4 * cin, C)),                                         # w1_prev
            wspec((4 * cin, C)),                                         # w1_odd
            wspec((1, C)),                                               # b1
            wspec((C, C)),                                               # w2_m1
            wspec((C, C)),                                               # w2_c
            wspec((C, C)),                                               # w2_p1
            wspec((1, C)),                                               # b2
            wspec((C, n_pad)),                                           # wp
        ],
        out_specs=pl.BlockSpec((1, t2, n_pad), lambda bidx: (bidx, 0, 0)),
        compiler_params=pltpu.CompilerParams(
            dimension_semantics=("parallel",),
            vmem_limit_bytes=32 * 1024 * 1024,
        ),
        cost_estimate=pl.CostEstimate(flops=flops, transcendentals=0,
                                      bytes_accessed=bytes_accessed),
    )(x4, w1_even_b, w1_prev_b, w1_odd_b, b1_2d,
      w2_m1_b, w2_c_b, w2_p1_b, b2_2d, wp_b)

    out = out_full if n_pad == dim else out_full[..., :dim]
    if lengths is not None:
        lengths = (lengths + subsampling_factor - 1) // subsampling_factor
    return out, lengths


# ----------------------------------------------------------------------------
# Parameter init (PyTorch layouts: conv (C_out, C_in, 3); Linear weight stored transposed)
# ----------------------------------------------------------------------------
def init_params(key, dim_in, num_channels, dim, num_layers):
    keys = jax.random.split(key, 2 * num_layers + 1)
    convs = []
    in_ch = [dim_in] + [num_channels] * (num_layers - 1)
    for i in range(num_layers):
        w = jax.random.normal(keys[2 * i], (num_channels, in_ch[i], 3), jnp.float32) * 0.1
        b = jax.random.normal(keys[2 * i + 1], (num_channels,), jnp.float32) * 0.1
        convs.append((w, b))
    conv_outdim = 1 * num_channels                  # conv1d path: last_dim = 1
    proj_t = jax.random.normal(keys[-1], (conv_outdim, dim), jnp.float32) * 0.1
    return {"convs": convs, "proj": proj_t}


# ----------------------------------------------------------------------------
# Pure-JAX reference (mirrors the kernel's bf16 rounding of matmul inputs)
# ----------------------------------------------------------------------------
def _reference_forward(x, lengths, params, subsampling_factor):
    def bf(a):
        return a.astype(jnp.bfloat16).astype(jnp.float32)

    h = bf(x)
    for w, b in params["convs"]:
        _, T, cin = h.shape
        t_out = (T - 1) // 2 + 1
        h_pad = jnp.pad(h, ((0, 0), (1, 1), (0, 0)))
        cols = jnp.concatenate([h_pad[:, k:k + 2 * t_out:2, :] for k in range(3)], axis=-1)
        w_mat = bf(jnp.transpose(w, (2, 1, 0)).reshape(3 * cin, w.shape[0]))
        h = jnp.maximum(jnp.einsum("btk,kn->btn", cols, w_mat) + b, 0.0)
        h = bf(h)
    out = jnp.einsum("btc,cd->btd", h, bf(params["proj"]))
    if lengths is not None:
        lengths = (lengths + subsampling_factor - 1) // subsampling_factor
    return out, lengths


if __name__ == "__main__":
    # Config: type='conv1d', causal=False, activation='relu', subsampling_factor=4
    B, T, DIM_IN, NUM_CHANNELS, DIM = 2, 16, 32, 32, 64
    SUBSAMPLING_FACTOR = 4
    NUM_LAYERS = int(math.log(SUBSAMPLING_FACTOR, 2))   # = 2

    key = jax.random.PRNGKey(0)
    k_x, k_p = jax.random.split(key)
    x = jax.random.normal(k_x, (B, T, DIM_IN), jnp.float32)
    lengths = jnp.array([16, 12], jnp.int32)
    params = init_params(k_p, DIM_IN, NUM_CHANNELS, DIM, NUM_LAYERS)

    fwd = jax.jit(functools.partial(conv_subsampler_forward,
                                    subsampling_factor=SUBSAMPLING_FACTOR))
    out, new_lengths = fwd(x, lengths, params)
    out = jax.block_until_ready(out)
    new_lengths = jax.block_until_ready(new_lengths)

    ref_out, ref_len = _reference_forward(x, lengths, params, SUBSAMPLING_FACTOR)

    assert out.shape == (B, T // SUBSAMPLING_FACTOR, DIM), out.shape
    assert bool(jnp.all(new_lengths == ref_len))
    max_err = float(jnp.max(jnp.abs(out - ref_out)))
    assert bool(jnp.allclose(out, ref_out, rtol=2e-2, atol=2e-2)), max_err

    print("KERNEL_OK")
</pallas_src>

<mosaic_0001>
module attributes {stable_mosaic.version = 11 : i64} {
  func.func @_subsampler_fused_kernel(%arg0: i32, %arg1: memref<1x4x128xbf16, #tpu.memory_space<vmem>>, %arg2: memref<128x32xbf16, #tpu.memory_space<vmem>>, %arg3: memref<128x32xbf16, #tpu.memory_space<vmem>>, %arg4: memref<128x32xbf16, #tpu.memory_space<vmem>>, %arg5: memref<1x32xf32, #tpu.memory_space<vmem>>, %arg6: memref<32x32xbf16, #tpu.memory_space<vmem>>, %arg7: memref<32x32xbf16, #tpu.memory_space<vmem>>, %arg8: memref<32x32xbf16, #tpu.memory_space<vmem>>, %arg9: memref<1x32xf32, #tpu.memory_space<vmem>>, %arg10: memref<32x128xbf16, #tpu.memory_space<vmem>>, %arg11: memref<1x4x128xf32, #tpu.memory_space<vmem>>) attributes {dimension_semantics = [#tpu.dimension_semantics<parallel>], iteration_bounds = array<i64: 2>, scalar_prefetch = 0 : i64, scratch_operands = 0 : i64, tpu.core_type = #tpu.core_type<tc>, window_params = [{transform_indices = @transform_0, window_bounds = array<i64: 1, 4, 128>}, {pipeline_mode = #tpu.pipeline_mode<synchronous>, transform_indices = @transform_1, window_bounds = array<i64: 128, 32>}, {pipeline_mode = #tpu.pipeline_mode<synchronous>, transform_indices = @transform_2, window_bounds = array<i64: 128, 32>}, {pipeline_mode = #tpu.pipeline_mode<synchronous>, transform_indices = @transform_3, window_bounds = array<i64: 128, 32>}, {pipeline_mode = #tpu.pipeline_mode<synchronous>, transform_indices = @transform_4, window_bounds = array<i64: 1, 32>}, {pipeline_mode = #tpu.pipeline_mode<synchronous>, transform_indices = @transform_5, window_bounds = array<i64: 32, 32>}, {pipeline_mode = #tpu.pipeline_mode<synchronous>, transform_indices = @transform_6, window_bounds = array<i64: 32, 32>}, {pipeline_mode = #tpu.pipeline_mode<synchronous>, transform_indices = @transform_7, window_bounds = array<i64: 32, 32>}, {pipeline_mode = #tpu.pipeline_mode<synchronous>, transform_indices = @transform_8, window_bounds = array<i64: 1, 32>}, {pipeline_mode = #tpu.pipeline_mode<synchronous>, transform_indices = @transform_9, window_bounds = array<i64: 32, 128>}, {transform_indices = @transform_10, window_bounds = array<i64: 1, 4, 128>}]} {
    %c0 = arith.constant 0 : index
    %c0_0 = arith.constant 0 : index
    %c0_1 = arith.constant 0 : index
    %0 = vector.load %arg1[%c0, %c0_0, %c0_1] : memref<1x4x128xbf16, #tpu.memory_space<vmem>>, vector<1x4x128xbf16>
    %1 = vector.shape_cast %0 : vector<1x4x128xbf16> to vector<4x128xbf16>
    %cst = arith.constant 0.000000e+00 : bf16
    %2 = vector.broadcast %cst : bf16 to vector<1x128xbf16>
    %3 = vector.extract_strided_slice %1 {offsets = [0, 0], sizes = [3, 128], strides = [1, 1]} : vector<4x128xbf16> to vector<3x128xbf16>
    %4 = tpu.concatenate %2, %3 in 0 : vector<1x128xbf16>, vector<3x128xbf16> -> vector<4x128xbf16>
    %c0_2 = arith.constant 0 : index
    %c0_3 = arith.constant 0 : index
    %5 = vector.load %arg5[%c0_2, %c0_3] : memref<1x32xf32, #tpu.memory_space<vmem>>, vector<1x32xf32>
    %c0_4 = arith.constant 0 : index
    %c0_5 = arith.constant 0 : index
    %6 = vector.load %arg2[%c0_4, %c0_5] : memref<128x32xbf16, #tpu.memory_space<vmem>>, vector<128x32xbf16>
    %cst_6 = arith.constant dense<0.000000e+00> : vector<4x32xf32>
    %7 = tpu.matmul %1, %6, %cst_6 {dimension_numbers = #tpu.dot_dimension_numbers<[1], [0], [0], [1], [0, 0, 1, 1], [], []>} : vector<4x128xbf16>, vector<128x32xbf16>, vector<4x32xf32> -> vector<4x32xf32>
    %c0_7 = arith.constant 0 : index
    %c0_8 = arith.constant 0 : index
    %8 = vector.load %arg3[%c0_7, %c0_8] : memref<128x32xbf16, #tpu.memory_space<vmem>>, vector<128x32xbf16>
    %cst_9 = arith.constant dense<0.000000e+00> : vector<4x32xf32>
    %9 = tpu.matmul %4, %8, %cst_9 {dimension_numbers = #tpu.dot_dimension_numbers<[1], [0], [0], [1], [0, 0, 1, 1], [], []>} : vector<4x128xbf16>, vector<128x32xbf16>, vector<4x32xf32> -> vector<4x32xf32>
    %10 = arith.addf %7, %9 : vector<4x32xf32>
    %11 = vector.broadcast %5 : vector<1x32xf32> to vector<4x32xf32>
    %12 = arith.addf %10, %11 : vector<4x32xf32>
    %cst_10 = arith.constant 0.000000e+00 : f32
    %13 = vector.broadcast %cst_10 : f32 to vector<4x32xf32>
    %14 = arith.maximumf %12, %13 : vector<4x32xf32>
    %c0_11 = arith.constant 0 : index
    %c0_12 = arith.constant 0 : index
    %15 = vector.load %arg4[%c0_11, %c0_12] : memref<128x32xbf16, #tpu.memory_space<vmem>>, vector<128x32xbf16>
    %cst_13 = arith.constant dense<0.000000e+00> : vector<4x32xf32>
    %16 = tpu.matmul %1, %15, %cst_13 {dimension_numbers = #tpu.dot_dimension_numbers<[1], [0], [0], [1], [0, 0, 1, 1], [], []>} : vector<4x128xbf16>, vector<128x32xbf16>, vector<4x32xf32> -> vector<4x32xf32>
    %17 = vector.broadcast %5 : vector<1x32xf32> to vector<4x32xf32>
    %18 = arith.addf %16, %17 : vector<4x32xf32>
    %cst_14 = arith.constant 0.000000e+00 : f32
    %19 = vector.broadcast %cst_14 : f32 to vector<4x32xf32>
    %20 = arith.maximumf %18, %19 : vector<4x32xf32>
    %21 = arith.truncf %14 : vector<4x32xf32> to vector<4x32xbf16>
    %22 = arith.truncf %20 : vector<4x32xf32> to vector<4x32xbf16>
    %cst_15 = arith.constant 0.000000e+00 : bf16
    %23 = vector.broadcast %cst_15 : bf16 to vector<1x32xbf16>
    %24 = vector.extract_strided_slice %22 {offsets = [0, 0], sizes = [3, 32], strides = [1, 1]} : vector<4x32xbf16> to vector<3x32xbf16>
    %25 = tpu.concatenate %23, %24 in 0 : vector<1x32xbf16>, vector<3x32xbf16> -> vector<4x32xbf16>
    %c0_16 = arith.constant 0 : index
    %c0_17 = arith.constant 0 : index
    %26 = vector.load %arg6[%c0_16, %c0_17] : memref<32x32xbf16, #tpu.memory_space<vmem>>, vector<32x32xbf16>
    %cst_18 = arith.constant dense<0.000000e+00> : vector<4x32xf32>
    %27 = tpu.matmul %25, %26, %cst_18 {dimension_numbers = #tpu.dot_dimension_numbers<[1], [0], [0], [1], [0, 0, 1, 1], [], []>} : vector<4x32xbf16>, vector<32x32xbf16>, vector<4x32xf32> -> vector<4x32xf32>
    %c0_19 = arith.constant 0 : index
    %c0_20 = arith.constant 0 : index
    %28 = vector.load %arg7[%c0_19, %c0_20] : memref<32x32xbf16, #tpu.memory_space<vmem>>, vector<32x32xbf16>
    %cst_21 = arith.constant dense<0.000000e+00> : vector<4x32xf32>
    %29 = tpu.matmul %21, %28, %cst_21 {dimension_numbers = #tpu.dot_dimension_numbers<[1], [0], [0], [1], [0, 0, 1, 1], [], []>} : vector<4x32xbf16>, vector<32x32xbf16>, vector<4x32xf32> -> vector<4x32xf32>
    %30 = arith.addf %27, %29 : vector<4x32xf32>
    %c0_22 = arith.constant 0 : index
    %c0_23 = arith.constant 0 : index
    %31 = vector.load %arg8[%c0_22, %c0_23] : memref<32x32xbf16, #tpu.memory_space<vmem>>, vector<32x32xbf16>
    %cst_24 = arith.constant dense<0.000000e+00> : vector<4x32xf32>
    %32 = tpu.matmul %22, %31, %cst_24 {dimension_numbers = #tpu.dot_dimension_numbers<[1], [0], [0], [1], [0, 0, 1, 1], [], []>} : vector<4x32xbf16>, vector<32x32xbf16>, vector<4x32xf32> -> vector<4x32xf32>
    %33 = arith.addf %30, %32 : vector<4x32xf32>
    %c0_25 = arith.constant 0 : index
    %c0_26 = arith.constant 0 : index
    %34 = vector.load %arg9[%c0_25, %c0_26] : memref<1x32xf32, #tpu.memory_space<vmem>>, vector<1x32xf32>
    %35 = vector.broadcast %34 : vector<1x32xf32> to vector<4x32xf32>
    %36 = arith.addf %33, %35 : vector<4x32xf32>
    %cst_27 = arith.constant 0.000000e+00 : f32
    %37 = vector.broadcast %cst_27 : f32 to vector<4x32xf32>
    %38 = arith.maximumf %36, %37 : vector<4x32xf32>
    %39 = arith.truncf %38 : vector<4x32xf32> to vector<4x32xbf16>
    %c0_28 = arith.constant 0 : index
    %c0_29 = arith.constant 0 : index
    %40 = vector.load %arg10[%c0_28, %c0_29] : memref<32x128xbf16, #tpu.memory_space<vmem>>, vector<32x128xbf16>
    %cst_30 = arith.constant dense<0.000000e+00> : vector<4x128xf32>
    %41 = tpu.matmul %39, %40, %cst_30 {dimension_numbers = #tpu.dot_dimension_numbers<[1], [0], [0], [1], [0, 0, 1, 1], [], []>} : vector<4x32xbf16>, vector<32x128xbf16>, vector<4x128xf32> -> vector<4x128xf32>
    %c0_31 = arith.constant 0 : index
    %c0_32 = arith.constant 0 : index
    %c0_33 = arith.constant 0 : index
    %42 = vector.load %arg11[%c0_31, %c0_32, %c0_33] : memref<1x4x128xf32, #tpu.memory_space<vmem>>, vector<1x4x128xf32>
    %43 = vector.shape_cast %42 : vector<1x4x128xf32> to vector<4x128xf32>
    %44 = vector.shape_cast %41 : vector<4x128xf32> to vector<1x4x128xf32>
    tpu.vector_store %arg11[%c0_31, %c0_32, %c0_33], %44 {strides = array<i32>} : memref<1x4x128xf32, #tpu.memory_space<vmem>>, vector<1x4x128xf32>,
    return
  }
  func.func @transform_0(%arg0: i32) -> (i32, i32, i32) {
    %c0_i32 = arith.constant 0 : i32
    %c0_i32_0 = arith.constant 0 : i32
    %c0_i32_1 = arith.constant 0 : i32
    return %arg0, %c0_i32, %c0_i32_0 : i32, i32, i32
  }
  func.func @transform_1(%arg0: i32) -> (i32, i32) {
    %c0_i32 = arith.constant 0 : i32
    %c0_i32_0 = arith.constant 0 : i32
    %c0_i32_1 = arith.constant 0 : i32
    return %c0_i32, %c0_i32_0 : i32, i32
  }
  func.func @transform_2(%arg0: i32) -> (i32, i32) {
    %c0_i32 = arith.constant 0 : i32
    %c0_i32_0 = arith.constant 0 : i32
    %c0_i32_1 = arith.constant 0 : i32
    return %c0_i32, %c0_i32_0 : i32, i32
  }
  func.func @transform_3(%arg0: i32) -> (i32, i32) {
    %c0_i32 = arith.constant 0 : i32
    %c0_i32_0 = arith.constant 0 : i32
    %c0_i32_1 = arith.constant 0 : i32
    return %c0_i32, %c0_i32_0 : i32, i32
  }
  func.func @transform_4(%arg0: i32) -> (i32, i32) {
    %c0_i32 = arith.constant 0 : i32
    %c0_i32_0 = arith.constant 0 : i32
    %c0_i32_1 = arith.constant 0 : i32
    return %c0_i32, %c0_i32_0 : i32, i32
  }
  func.func @transform_5(%arg0: i32) -> (i32, i32) {
    %c0_i32 = arith.constant 0 : i32
    %c0_i32_0 = arith.constant 0 : i32
    %c0_i32_1 = arith.constant 0 : i32
    return %c0_i32, %c0_i32_0 : i32, i32
  }
  func.func @transform_6(%arg0: i32) -> (i32, i32) {
    %c0_i32 = arith.constant 0 : i32
    %c0_i32_0 = arith.constant 0 : i32
    %c0_i32_1 = arith.constant 0 : i32
    return %c0_i32, %c0_i32_0 : i32, i32
  }
  func.func @transform_7(%arg0: i32) -> (i32, i32) {
    %c0_i32 = arith.constant 0 : i32
    %c0_i32_0 = arith.constant 0 : i32
    %c0_i32_1 = arith.constant 0 : i32
    return %c0_i32, %c0_i32_0 : i32, i32
  }
  func.func @transform_8(%arg0: i32) -> (i32, i32) {
    %c0_i32 = arith.constant 0 : i32
    %c0_i32_0 = arith.constant 0 : i32
    %c0_i32_1 = arith.constant 0 : i32
    return %c0_i32, %c0_i32_0 : i32, i32
  }
  func.func @transform_9(%arg0: i32) -> (i32, i32) {
    %c0_i32 = arith.constant 0 : i32
    %c0_i32_0 = arith.constant 0 : i32
    %c0_i32_1 = arith.constant 0 : i32
    return %c0_i32, %c0_i32_0 : i32, i32
  }
  func.func @transform_10(%arg0: i32) -> (i32, i32, i32) {
    %c0_i32 = arith.constant 0 : i32
    %c0_i32_0 = arith.constant 0 : i32
    %c0_i32_1 = arith.constant 0 : i32
    return %arg0, %c0_i32, %c0_i32_0 : i32, i32, i32
  }
}

</mosaic_0001>

<llo_original>
// kernel: conv_subsampler_forward.1
$region0: #{conv_subsampler_forward.1}
  #allocation0 [shape = 'u32[]', space=smem, size = 0x4, offset = 0x4, fixed_abs, tag = 'smem constant byte address 0x4 - core index']
  #allocation1 [shape = 'u32[72,128]{1,0:T(1,128)}', space=vmem, size = 0x9000, scoped, tag = 'internal scratch']
  %s0 = inlined_call_operand.vmem [shape: bf16[2,4,128], index: 0, kind: input, shape index: {}]
  %s1 = inlined_call_operand.vmem [shape: bf16[128,32], index: 1, kind: input, shape index: {}]
  %s2 = inlined_call_operand.vmem [shape: bf16[128,32], index: 2, kind: input, shape index: {}]
  %s3 = inlined_call_operand.vmem [shape: bf16[128,32], index: 3, kind: input, shape index: {}]
  %s4 = inlined_call_operand.vmem [shape: f32[1,32], index: 4, kind: input, shape index: {}]
  %s5 = inlined_call_operand.vmem [shape: bf16[32,32], index: 5, kind: input, shape index: {}]
  %s6 = inlined_call_operand.vmem [shape: bf16[32,32], index: 6, kind: input, shape index: {}]
  %s7 = inlined_call_operand.vmem [shape: bf16[32,32], index: 7, kind: input, shape index: {}]
  %s8 = inlined_call_operand.vmem [shape: f32[1,32], index: 8, kind: input, shape index: {}]
  %s9 = inlined_call_operand.vmem [shape: bf16[32,128], index: 9, kind: input, shape index: {}]
  %s10 = inlined_call_operand.hbm [shape: f32[2,4,128], index: 10, kind: output, shape index: {}]
  %s11 = sld [smem:[#allocation0]]
  $region73: #{conv_subsampler_forward.1} parent=0
    _
  %s13 = ssub.s32 1, %s11
  %s14 = scalar_select 0, %s13, %s11
  $region1: #{conv_subsampler_forward.1} parent=0
    #allocation2 [shape = 'u8[4096]{0}', space=vmem, size = 0x1000, scoped, tag = 'output window, operand 0']
    #allocation3 [shape = 's32[2]{0}', space=sflag, size = 0x8, scoped, tag = 'scoped memory for conv_subsampler_forward.1']
    %15 = vsyncpa [#allocation3], 0
    %s16 = scalar_lea.sflag [#allocation3], 1
    %17 = vsyncpa %s16, 0
    loop: start=0, step=1, limit=4
    $region2: #{conv_subsampler_forward.1} parent=1 // loop_pre_header
      _
    $region3: #{conv_subsampler_forward.1} parent=1 // loop_header
      %s19 = sphi 0, %s23
      %p20 = scmp.ge.s32.totalorder %s19, 4
      %s29 = sphi 0, %s31
      %s32 = sphi 0, %s29
      %s33 = sphi 0, %s32
      %s49 = sphi 0, %s33
      %s53 = sphi 0, %s53
      %s55 = sphi 0, %s53
      %s56 = sphi 0, %s55
      %s70 = sphi 0, %s56
      %s74 = sphi 0, %s74
      %s76 = sphi 0, %s74
      %s77 = sphi 0, %s76
      %s91 = sphi 0, %s77
      %s95 = sphi 0, %s95
      %s97 = sphi 0, %s95
      %s98 = sphi 0, %s97
      %s112 = sphi 0, %s98
      %s116 = sphi 0, %s116
      %s118 = sphi 0, %s116
      %s119 = sphi 0, %s118
      %s133 = sphi 0, %s119
      %s137 = sphi 0, %s137
      %s139 = sphi 0, %s137
      %s140 = sphi 0, %s139
      %s154 = sphi 0, %s140
      %s158 = sphi 0, %s158
      %s160 = sphi 0, %s158
      %s161 = sphi 0, %s160
      %s175 = sphi 0, %s161
      %s179 = sphi 0, %s179
      %s181 = sphi 0, %s179
      %s182 = sphi 0, %s181
      %s196 = sphi 0, %s182
      %s200 = sphi 0, %s200
      %s202 = sphi 0, %s200
      %s203 = sphi 0, %s202
      %s217 = sphi 0, %s203
      %s221 = sphi 0, %s221
      %s223 = sphi 0, %s221
      %s224 = sphi 0, %s223
      %s238 = sphi 0, %s224
      %s244 = sphi 0, %s246
      %s247 = sphi 0, %s244
      %s248 = sphi 0, %s247
      %s264 = sphi 0, %s248
    $region4: #{conv_subsampler_forward.1} parent=1 // loop_header_branch
      %22 = sbr.rel (%p20) target = $region8
    $region5: #{conv_subsampler_forward.1} parent=1 // loop_body
      %s24 = ssub.s32 %s19, 1
      %s25 = ssub.s32 %s19, 2
      %s26 = sadd.s32 %s19, 1
      %s27 = ssub.s32 %s19, %s26
      %p28 = scmp.eq.s32.totalorder %s27, 0
      %s30 = sadd.s32 %s29, 1
      %s31 = scalar_select %p28, %s29, %s30
      %p34 = pneg %p28
      %p35 = scmp.eq.s32.totalorder %s19, 1
      %p36 = por %p34, %p35
      %p37 = scmp.ne.s32.totalorder %s29, %s32
      %p38 = scmp.eq.s32.totalorder %s19, 0
      %p39 = por %p37, %p38
      %p40 = scmp.ne.s32.totalorder %s29, %s32
      %p41 = scmp.eq.s32.totalorder %s24, 1
      %p42 = por %p40, %p41
      %p43 = scmp.ne.s32.totalorder %s32, %s33
      %p44 = scmp.eq.s32.totalorder %s24, 0
      %p45 = por %p43, %p44
      %p46 = scmp.ne.s32.totalorder %s32, %s33
      %p47 = scmp.eq.s32.totalorder %s25, 1
      %p48 = por %p46, %p47
      %p50 = scmp.ne.s32.totalorder %s33, %s49
      %p51 = scmp.eq.s32.totalorder %s25, 0
      %p52 = por %p50, %p51
      %s54 = sadd.s32 %s53, 1
      %p57 = scmp.eq.s32.totalorder %s19, 1
      %p58 = scmp.ne.s32.totalorder %s53, %s55
      %p59 = scmp.eq.s32.totalorder %s19, 0
      %p60 = por %p58, %p59
      %p61 = scmp.ne.s32.totalorder %s53, %s55
      %p62 = scmp.eq.s32.totalorder %s24, 1
      %p63 = por %p61, %p62
      %p64 = scmp.ne.s32.totalorder %s55, %s56
      %p65 = scmp.eq.s32.totalorder %s24, 0
      %p66 = por %p64, %p65
      %p67 = scmp.ne.s32.totalorder %s55, %s56
      %p68 = scmp.eq.s32.totalorder %s25, 1
      %p69 = por %p67, %p68
      %p71 = scmp.ne.s32.totalorder %s56, %s70
      %p72 = scmp.eq.s32.totalorder %s25, 0
      %p73 = por %p71, %p72
      %s75 = sadd.s32 %s74, 1
      %p78 = scmp.eq.s32.totalorder %s19, 1
      %p79 = scmp.ne.s32.totalorder %s74, %s76
      %p80 = scmp.eq.s32.totalorder %s19, 0
      %p81 = por %p79, %p80
      %p82 = scmp.ne.s32.totalorder %s74, %s76
      %p83 = scmp.eq.s32.totalorder %s24, 1
      %p84 = por %p82, %p83
      %p85 = scmp.ne.s32.totalorder %s76, %s77
      %p86 = scmp.eq.s32.totalorder %s24, 0
      %p87 = por %p85, %p86
      %p88 = scmp.ne.s32.totalorder %s76, %s77
      %p89 = scmp.eq.s32.totalorder %s25, 1
      %p90 = por %p88, %p89
      %p92 = scmp.ne.s32.totalorder %s77, %s91
      %p93 = scmp.eq.s32.totalorder %s25, 0
      %p94 = por %p92, %p93
      %s96 = sadd.s32 %s95, 1
      %p99 = scmp.eq.s32.totalorder %s19, 1
      %p100 = scmp.ne.s32.totalorder %s95, %s97
      %p101 = scmp.eq.s32.totalorder %s19, 0
      %p102 = por %p100, %p101
      %p103 = scmp.ne.s32.totalorder %s95, %s97
      %p104 = scmp.eq.s32.totalorder %s24, 1
      %p105 = por %p103, %p104
      %p106 = scmp.ne.s32.totalorder %s97, %s98
      %p107 = scmp.eq.s32.totalorder %s24, 0
      %p108 = por %p106, %p107
      %p109 = scmp.ne.s32.totalorder %s97, %s98
      %p110 = scmp.eq.s32.totalorder %s25, 1
      %p111 = por %p109, %p110
      %p113 = scmp.ne.s32.totalorder %s98, %s112
      %p114 = scmp.eq.s32.totalorder %s25, 0
      %p115 = por %p113, %p114
      %s117 = sadd.s32 %s116, 1
      %p120 = scmp.eq.s32.totalorder %s19, 1
      %p121 = scmp.ne.s32.totalorder %s116, %s118
      %p122 = scmp.eq.s32.totalorder %s19, 0
      %p123 = por %p121, %p122
      %p124 = scmp.ne.s32.totalorder %s116, %s118
      %p125 = scmp.eq.s32.totalorder %s24, 1
      %p126 = por %p124, %p125
      %p127 = scmp.ne.s32.totalorder %s118, %s119
      %p128 = scmp.eq.s32.totalorder %s24, 0
      %p129 = por %p127, %p128
      %p130 = scmp.ne.s32.totalorder %s118, %s119
      %p131 = scmp.eq.s32.totalorder %s25, 1
      %p132 = por %p130, %p131
      %p134 = scmp.ne.s32.totalorder %s119, %s133
      %p135 = scmp.eq.s32.totalorder %s25, 0
      %p136 = por %p134, %p135
      %s138 = sadd.s32 %s137, 1
      %p141 = scmp.eq.s32.totalorder %s19, 1
      %p142 = scmp.ne.s32.totalorder %s137, %s139
      %p143 = scmp.eq.s32.totalorder %s19, 0
      %p144 = por %p142, %p143
      %p145 = scmp.ne.s32.totalorder %s137, %s139
      %p146 = scmp.eq.s32.totalorder %s24, 1
      %p147 = por %p145, %p146
      %p148 = scmp.ne.s32.totalorder %s139, %s140
      %p149 = scmp.eq.s32.totalorder %s24, 0
      %p150 = por %p148, %p149
      %p151 = scmp.ne.s32.totalorder %s139, %s140
      %p152 = scmp.eq.s32.totalorder %s25, 1
      %p153 = por %p151, %p152
      %p155 = scmp.ne.s32.totalorder %s140, %s154
      %p156 = scmp.eq.s32.totalorder %s25, 0
      %p157 = por %p155, %p156
      %s159 = sadd.s32 %s158, 1
      %p162 = scmp.eq.s32.totalorder %s19, 1
      %p163 = scmp.ne.s32.totalorder %s158, %s160
      %p164 = scmp.eq.s32.totalorder %s19, 0
      %p165 = por %p163, %p164
      %p166 = scmp.ne.s32.totalorder %s158, %s160
      %p167 = scmp.eq.s32.totalorder %s24, 1
      %p168 = por %p166, %p167
      %p169 = scmp.ne.s32.totalorder %s160, %s161
      %p170 = scmp.eq.s32.totalorder %s24, 0
      %p171 = por %p169, %p170
      %p172 = scmp.ne.s32.totalorder %s160, %s161
      %p173 = scmp.eq.s32.totalorder %s25, 1
      %p174 = por %p172, %p173
      %p176 = scmp.ne.s32.totalorder %s161, %s175
      %p177 = scmp.eq.s32.totalorder %s25, 0
      %p178 = por %p176, %p177
      %s180 = sadd.s32 %s179, 1
      %p183 = scmp.eq.s32.totalorder %s19, 1
      %p184 = scmp.ne.s32.totalorder %s179, %s181
      %p185 = scmp.eq.s32.totalorder %s19, 0
      %p186 = por %p184, %p185
      %p187 = scmp.ne.s32.totalorder %s179, %s181
      %p188 = scmp.eq.s32.totalorder %s24, 1
      %p189 = por %p187, %p188
      %p190 = scmp.ne.s32.totalorder %s181, %s182
      %p191 = scmp.eq.s32.totalorder %s24, 0
      %p192 = por %p190, %p191
      %p193 = scmp.ne.s32.totalorder %s181, %s182
      %p194 = scmp.eq.s32.totalorder %s25, 1
      %p195 = por %p193, %p194
      %p197 = scmp.ne.s32.totalorder %s182, %s196
      %p198 = scmp.eq.s32.totalorder %s25, 0
      %p199 = por %p197, %p198
      %s201 = sadd.s32 %s200, 1
      %p204 = scmp.eq.s32.totalorder %s19, 1
      %p205 = scmp.ne.s32.totalorder %s200, %s202
      %p206 = scmp.eq.s32.totalorder %s19, 0
      %p207 = por %p205, %p206
      %p208 = scmp.ne.s32.totalorder %s200, %s202
      %p209 = scmp.eq.s32.totalorder %s24, 1
      %p210 = por %p208, %p209
      %p211 = scmp.ne.s32.totalorder %s202, %s203
      %p212 = scmp.eq.s32.totalorder %s24, 0
      %p213 = por %p211, %p212
      %p214 = scmp.ne.s32.totalorder %s202, %s203
      %p215 = scmp.eq.s32.totalorder %s25, 1
      %p216 = por %p214, %p215
      %p218 = scmp.ne.s32.totalorder %s203, %s217
      %p219 = scmp.eq.s32.totalorder %s25, 0
      %p220 = por %p218, %p219
      %s222 = sadd.s32 %s221, 1
      %p225 = scmp.eq.s32.totalorder %s19, 1
      %p226 = scmp.ne.s32.totalorder %s221, %s223
      %p227 = scmp.eq.s32.totalorder %s19, 0
      %p228 = por %p226, %p227
      %p229 = scmp.ne.s32.totalorder %s221, %s223
      %p230 = scmp.eq.s32.totalorder %s24, 1
      %p231 = por %p229, %p230
      %p232 = scmp.ne.s32.totalorder %s223, %s224
      %p233 = scmp.eq.s32.totalorder %s24, 0
      %p234 = por %p232, %p233
      %p235 = scmp.ne.s32.totalorder %s223, %s224
      %p236 = scmp.eq.s32.totalorder %s25, 1
      %p237 = por %p235, %p236
      %p239 = scmp.ne.s32.totalorder %s224, %s238
      %p240 = scmp.eq.s32.totalorder %s25, 0
      %p241 = por %p239, %p240
      %s242 = ssub.s32 %s19, %s26
      %p243 = scmp.eq.s32.totalorder %s242, 0
      %s245 = sadd.s32 %s244, 1
      %s246 = scalar_select %p243, %s244, %s245
      %p249 = pneg %p243
      %p250 = scmp.eq.s32.totalorder %s19, 1
      %p251 = por %p249, %p250
      %p252 = scmp.ne.s32.totalorder %s244, %s247
      %p253 = scmp.eq.s32.totalorder %s19, 0
      %p254 = por %p252, %p253
      %p255 = scmp.ne.s32.totalorder %s244, %s247
      %p256 = scmp.eq.s32.totalorder %s24, 1
      %p257 = por %p255, %p256
      %p258 = scmp.ne.s32.totalorder %s247, %s248
      %p259 = scmp.eq.s32.totalorder %s24, 0
      %p260 = por %p258, %p259
      %p261 = scmp.ne.s32.totalorder %s247, %s248
      %p262 = scmp.eq.s32.totalorder %s25, 1
      %p263 = por %p261, %p262
      %p265 = scmp.ne.s32.totalorder %s248, %s264
      %p266 = scmp.eq.s32.totalorder %s25, 0
      %p267 = por %p265, %p266
      %p268 = scmp.le.s32.totalorder 1, %s19
      %p269 = scmp.lt.s32.totalorder %s19, 3
      %p270 = pnand %p268, %p269
      %p271 = pneg %p270
      // Predicated region
      $region9: #{conv_subsampler_forward.1} parent=5 // pred_check
        _
      $region10: #{conv_subsampler_forward.1} parent=5 // pred_check_branch
        %273 = sbr.rel (%p270) target = $region12
      $region11: #{conv_subsampler_forward.1} parent=5 // pred_region
        %s274 = ssub.s32 %s19, 1
        // Predicated region
        $region13: #{conv_subsampler_forward.1} parent=11 // pred_check
          %p275 = pneg %p66
        $region14: #{conv_subsampler_forward.1} parent=11 // pred_check_branch
          %277 = sbr.rel (%p275) target = $region16
        $region15: #{conv_subsampler_forward.1} parent=11 // pred_region
          _
        $region16: #{conv_subsampler_forward.1} parent=11 // pred_fallthru
          _
        // Predicated region
        $region17: #{conv_subsampler_forward.1} parent=11 // pred_check
          %p278 = pneg %p87
        $region18: #{conv_subsampler_forward.1} parent=11 // pred_check_branch
          %280 = sbr.rel (%p278) target = $region20
        $region19: #{conv_subsampler_forward.1} parent=11 // pred_region
          _
        $region20: #{conv_subsampler_forward.1} parent=11 // pred_fallthru
          _
        // Predicated region
        $region21: #{conv_subsampler_forward.1} parent=11 // pred_check
          %p281 = pneg %p108
        $region22: #{conv_subsampler_forward.1} parent=11 // pred_check_branch
          %283 = sbr.rel (%p281) target = $region24
        $region23: #{conv_subsampler_forward.1} parent=11 // pred_region
          _
        $region24: #{conv_subsampler_forward.1} parent=11 // pred_fallthru
          _
        // Predicated region
        $region25: #{conv_subsampler_forward.1} parent=11 // pred_check
          %p284 = pneg %p129
        $region26: #{conv_subsampler_forward.1} parent=11 // pred_check_branch
          %286 = sbr.rel (%p284) target = $region28
        $region27: #{conv_subsampler_forward.1} parent=11 // pred_region
          _
        $region28: #{conv_subsampler_forward.1} parent=11 // pred_fallthru
          _
        // Predicated region
        $region29: #{conv_subsampler_forward.1} parent=11 // pred_check
          %p287 = pneg %p150
        $region30: #{conv_subsampler_forward.1} parent=11 // pred_check_branch
          %289 = sbr.rel (%p287) target = $region32
        $region31: #{conv_subsampler_forward.1} parent=11 // pred_region
          _
        $region32: #{conv_subsampler_forward.1} parent=11 // pred_fallthru
          _
        // Predicated region
        $region33: #{conv_subsampler_forward.1} parent=11 // pred_check
          %p290 = pneg %p171
        $region34: #{conv_subsampler_forward.1} parent=11 // pred_check_branch
          %292 = sbr.rel (%p290) target = $region36
        $region35: #{conv_subsampler_forward.1} parent=11 // pred_region
          _
        $region36: #{conv_subsampler_forward.1} parent=11 // pred_fallthru
          _
        // Predicated region
        $region37: #{conv_subsampler_forward.1} parent=11 // pred_check
          %p293 = pneg %p192
        $region38: #{conv_subsampler_forward.1} parent=11 // pred_check_branch
          %295 = sbr.rel (%p293) target = $region40
        $region39: #{conv_subsampler_forward.1} parent=11 // pred_region
          _
        $region40: #{conv_subsampler_forward.1} parent=11 // pred_fallthru
          _
        // Predicated region
        $region41: #{conv_subsampler_forward.1} parent=11 // pred_check
          %p296 = pneg %p213
        $region42: #{conv_subsampler_forward.1} parent=11 // pred_check_branch
          %298 = sbr.rel (%p296) target = $region44
        $region43: #{conv_subsampler_forward.1} parent=11 // pred_region
          _
        $region44: #{conv_subsampler_forward.1} parent=11 // pred_fallthru
          _
        // Predicated region
        $region45: #{conv_subsampler_forward.1} parent=11 // pred_check
          %p299 = pneg %p234
        $region46: #{conv_subsampler_forward.1} parent=11 // pred_check_branch
          %301 = sbr.rel (%p299) target = $region48
        $region47: #{conv_subsampler_forward.1} parent=11 // pred_region
          _
        $region48: #{conv_subsampler_forward.1} parent=11 // pred_fallthru
          _
      $region12: #{conv_subsampler_forward.1} parent=5 // pred_fallthru
        _
      %p302 = scmp.lt.s32.totalorder %s19, 2
      // Predicated region
      $region49: #{conv_subsampler_forward.1} parent=5 // pred_check
        %p303 = pneg %p302
      $region50: #{conv_subsampler_forward.1} parent=5 // pred_check_branch
        %305 = sbr.rel (%p303) target = $region52
      $region51: #{conv_subsampler_forward.1} parent=5 // pred_region
        // Predicated region
        $region53: #{conv_subsampler_forward.1} parent=51 // pred_check
          %p306 = pneg %p39
        $region54: #{conv_subsampler_forward.1} parent=51 // pred_check_branch
          %308 = sbr.rel (%p306) target = $region56
        $region55: #{conv_subsampler_forward.1} parent=51 // pred_region
          %p309 = scmp.lt.s32.totalorder %s19, 1
          %s310 = scalar_select %p309, %s19, 1
          %s311 = smul.addr %s310, 2
          %s312 = scalar_lea.vmem %s0, %s311
        $region56: #{conv_subsampler_forward.1} parent=51 // pred_fallthru
          _
      $region52: #{conv_subsampler_forward.1} parent=5 // pred_fallthru
        _
      %p313 = scmp.le.s32.totalorder 1, %s19
      %p314 = scmp.lt.s32.totalorder %s19, 3
      %p315 = pnand %p313, %p314
      %p316 = pneg %p315
      // Predicated region
      $region57: #{conv_subsampler_forward.1} parent=5 // pred_check
        _
      $region58: #{conv_subsampler_forward.1} parent=5 // pred_check_branch
        %318 = sbr.rel (%p315) target = $region60
      $region59: #{conv_subsampler_forward.1} parent=5 // pred_region
        %s319 = ssub.s32 %s19, 1
        %p320 = scmp.lt.s32.totalorder %s24, 1
        %s321 = scalar_select %p320, %s24, 1
        %s322 = smul.addr %s321, 2
        %s323 = scalar_lea.vmem %s0, %s322
        %p324 = pneg %p45
        %p325 = pneg %p42
        %p326 = pneg %p66
        %p327 = pneg %p63
        %p328 = pneg %p87
        %p329 = pneg %p84
        %p330 = pneg %p108
        %p331 = pneg %p105
        %p332 = pneg %p129
        %p333 = pneg %p126
        %p334 = pneg %p150
        %p335 = pneg %p147
        %p336 = pneg %p171
        %p337 = pneg %p168
        %p338 = pneg %p192
        %p339 = pneg %p189
        %p340 = pneg %p213
        %p341 = pneg %p210
        %p342 = pneg %p234
        %p343 = pneg %p231
        %p344 = pneg %p260
        %p345 = pneg %p257
        %s346 = sand.u32 %s247, 1
        %s347 = scalar_lea.sflag [#allocation3], %s346
        %s348 = sand.u32 %s247, 1
        %s349 = smul.addr %s348, 4
        %s350 = scalar_lea.vmem [#allocation2], %s349
        %p351 = scmp.lt.s32.totalorder %s24, 1
        %s352 = scalar_select %p351, %s24, 1
        %s353 = smul.addr %s352, 2
        %s354 = scalar_lea.vmem %s0, %s353
        %v356 = vld [vmem:[%s354] sm:$0x3]
        %358 = vst [vmem:[#allocation1] ss:$4 sm:$0xff] %v356
        %v359 = vld.sshfl [vmem:[#allocation1] sm:$0xff pattern:$0x73625140]
        %v360 = vshrl.u32 %v359, 16
        %v362 = vrot.slane %v360, 7
        %v363 = vshll.u32 %v359, 16
        %v365 = vor.u32 %v362, %v363
        %vm367 = vcmask 1040384
        %vm368 = vsmask.f32 256
        %vm369 = vmand %vm367, %vm368
        %v370 = vsel %vm369, 0, %v365
        %v371 = vld [vmem:[%s4] sm:$0x1]
        %v372 = vld [vmem:[%s1] sm:$0xf]
        %v373 = vld [vmem:[%s1 + $0x4] sm:$0xf]
        %v374 = vld [vmem:[%s1 + $0x8] sm:$0xf]
        %v375 = vld [vmem:[%s1 + $0xc] sm:$0xf]
        %v376 = vld [vmem:[%s1 + $0x10] sm:$0xf]
        %v377 = vld [vmem:[%s1 + $0x14] sm:$0xf]
        %v378 = vld [vmem:[%s1 + $0x18] sm:$0xf]
        %v379 = vld [vmem:[%s1 + $0x1c] sm:$0xf]
        %v380 = vld [vmem:[%s1 + $0x20] sm:$0xf]
        %v381 = vld [vmem:[%s1 + $0x24] sm:$0xf]
        %v382 = vld [vmem:[%s1 + $0x28] sm:$0xf]
        %v383 = vld [vmem:[%s1 + $0x2c] sm:$0xf]
        %v384 = vld [vmem:[%s1 + $0x30] sm:$0xf]
        %v385 = vld [vmem:[%s1 + $0x34] sm:$0xf]
        %v386 = vld [vmem:[%s1 + $0x38] sm:$0xf]
        %v387 = vld [vmem:[%s1 + $0x3c] sm:$0xf]
        %v388 = vld [vmem:[%s2] sm:$0xf]
        %v389 = vld [vmem:[%s2 + $0x4] sm:$0xf]
        %v390 = vld [vmem:[%s2 + $0x8] sm:$0xf]
        %v391 = vld [vmem:[%s2 + $0xc] sm:$0xf]
        %v392 = vld [vmem:[%s2 + $0x10] sm:$0xf]
        %v393 = vld [vmem:[%s2 + $0x14] sm:$0xf]
        %v394 = vld [vmem:[%s2 + $0x18] sm:$0xf]
        %v395 = vld [vmem:[%s2 + $0x1c] sm:$0xf]
        %v396 = vld [vmem:[%s2 + $0x20] sm:$0xf]
        %v397 = vld [vmem:[%s2 + $0x24] sm:$0xf]
        %v398 = vld [vmem:[%s2 + $0x28] sm:$0xf]
        %v399 = vld [vmem:[%s2 + $0x2c] sm:$0xf]
        %v400 = vld [vmem:[%s2 + $0x30] sm:$0xf]
        %v401 = vld [vmem:[%s2 + $0x34] sm:$0xf]
        %v402 = vld [vmem:[%s2 + $0x38] sm:$0xf]
        %v403 = vld [vmem:[%s2 + $0x3c] sm:$0xf]
        %v420 = vunpack.c.l.b16 %v388
        %v421 = vunpack.c.l.b16 %v389
        %v422 = vunpack.c.l.b16 %v390
        %v423 = vunpack.c.l.b16 %v391
        %v424 = vunpack.c.l.b16 %v392
        %v425 = vunpack.c.l.b16 %v393
        %v426 = vunpack.c.l.b16 %v394
        %v427 = vunpack.c.l.b16 %v395
        %v428 = vunpack.c.l.b16 %v396
        %v429 = vunpack.c.l.b16 %v397
        %v430 = vunpack.c.l.b16 %v398
        %v431 = vunpack.c.l.b16 %v399
        %v432 = vunpack.c.l.b16 %v400
        %v433 = vunpack.c.l.b16 %v401
        %v434 = vunpack.c.l.b16 %v402
        %v435 = vunpack.c.l.b16 %v403
        %v436 = vpack.c.b16 %v421, %v420
        %v437 = vpack.c.b16 %v423, %v422
        %v438 = vpack.c.b16 %v425, %v424
        %v439 = vpack.c.b16 %v427, %v426
        %v440 = vpack.c.b16 %v429, %v428
        %v441 = vpack.c.b16 %v431, %v430
        %v442 = vpack.c.b16 %v433, %v432
        %v443 = vpack.c.b16 %v435, %v434
        %452 = vmatpush.bf16.msra.mxu0 %v443
        %453 = vmatpush.bf16.msra.mxu0 %v442
        %454 = vmatpush.bf16.msra.mxu0 %v441
        %455 = vmatpush.bf16.msra.mxu0 %v440
        %456 = vmatpush.bf16.msra.mxu0 %v439
        %457 = vmatpush.bf16.msra.mxu0 %v438
        %458 = vmatpush.bf16.msra.mxu0 %v437
        %459 = vmatpush.bf16.msra.mxu0 %v436
        %460 = vmatmul.bf16.gmra.mxu0 %v370
        %v461 = vpop.f32.mrf.mxu0
        %v462 = vadd.f32 0.0, %v461
        %v463 = vpop.f32.mrf.mxu0
        %464 = vdwg.mxu0
        %v481 = vunpack.c.l.b16 %v372
        %v482 = vunpack.c.l.b16 %v373
        %v483 = vunpack.c.l.b16 %v374
        %v484 = vunpack.c.l.b16 %v375
        %v485 = vunpack.c.l.b16 %v376
        %v486 = vunpack.c.l.b16 %v377
        %v487 = vunpack.c.l.b16 %v378
        %v488 = vunpack.c.l.b16 %v379
        %v489 = vunpack.c.l.b16 %v380
        %v490 = vunpack.c.l.b16 %v381
        %v491 = vunpack.c.l.b16 %v382
        %v492 = vunpack.c.l.b16 %v383
        %v493 = vunpack.c.l.b16 %v384
        %v494 = vunpack.c.l.b16 %v385
        %v495 = vunpack.c.l.b16 %v386
        %v496 = vunpack.c.l.b16 %v387
        %v497 = vpack.c.b16 %v482, %v481
        %v498 = vpack.c.b16 %v484, %v483
        %v499 = vpack.c.b16 %v486, %v485
        %v500 = vpack.c.b16 %v488, %v487
        %v501 = vpack.c.b16 %v490, %v489
        %v502 = vpack.c.b16 %v492, %v491
        %v503 = vpack.c.b16 %v494, %v493
        %v504 = vpack.c.b16 %v496, %v495
        %513 = vmatpush.bf16.msra.mxu0 %v504
        %514 = vmatpush.bf16.msra.mxu0 %v503
        %515 = vmatpush.bf16.msra.mxu0 %v502
        %516 = vmatpush.bf16.msra.mxu0 %v501
        %517 = vmatpush.bf16.msra.mxu0 %v500
        %518 = vmatpush.bf16.msra.mxu0 %v499
        %519 = vmatpush.bf16.msra.mxu0 %v498
        %520 = vmatpush.bf16.msra.mxu0 %v497
        %521 = vmatmul.bf16.gmra.mxu0 %v356
        %v522 = vpop.f32.mrf.mxu0
        %v523 = vadd.f32 %v462, %v522
        %v524 = vpop.f32.mrf.mxu0
        %525 = vdwg.mxu0
        %v527 = vperm.slane %v371, 0
        %v529 = vadd.f32 %v523, %v527
        %v530 = vmax.f32 %v529, 0.0
        %v531 = vld [vmem:[%s3] sm:$0xf]
        %v532 = vld [vmem:[%s3 + $0x4] sm:$0xf]
        %v533 = vld [vmem:[%s3 + $0x8] sm:$0xf]
        %v534 = vld [vmem:[%s3 + $0xc] sm:$0xf]
        %v535 = vld [vmem:[%s3 + $0x10] sm:$0xf]
        %v536 = vld [vmem:[%s3 + $0x14] sm:$0xf]
        %v537 = vld [vmem:[%s3 + $0x18] sm:$0xf]
        %v538 = vld [vmem:[%s3 + $0x1c] sm:$0xf]
        %v539 = vld [vmem:[%s3 + $0x20] sm:$0xf]
        %v540 = vld [vmem:[%s3 + $0x24] sm:$0xf]
        %v541 = vld [vmem:[%s3 + $0x28] sm:$0xf]
        %v542 = vld [vmem:[%s3 + $0x2c] sm:$0xf]
        %v543 = vld [vmem:[%s3 + $0x30] sm:$0xf]
        %v544 = vld [vmem:[%s3 + $0x34] sm:$0xf]
        %v545 = vld [vmem:[%s3 + $0x38] sm:$0xf]
        %v546 = vld [vmem:[%s3 + $0x3c] sm:$0xf]
        %v563 = vunpack.c.l.b16 %v531
        %v564 = vunpack.c.l.b16 %v532
        %v565 = vunpack.c.l.b16 %v533
        %v566 = vunpack.c.l.b16 %v534
        %v567 = vunpack.c.l.b16 %v535
        %v568 = vunpack.c.l.b16 %v536
        %v569 = vunpack.c.l.b16 %v537
        %v570 = vunpack.c.l.b16 %v538
        %v571 = vunpack.c.l.b16 %v539
        %v572 = vunpack.c.l.b16 %v540
        %v573 = vunpack.c.l.b16 %v541
        %v574 = vunpack.c.l.b16 %v542
        %v575 = vunpack.c.l.b16 %v543
        %v576 = vunpack.c.l.b16 %v544
        %v577 = vunpack.c.l.b16 %v545
        %v578 = vunpack.c.l.b16 %v546
        %v579 = vpack.c.b16 %v564, %v563
        %v580 = vpack.c.b16 %v566, %v565
        %v581 = vpack.c.b16 %v568, %v567
        %v582 = vpack.c.b16 %v570, %v569
        %v583 = vpack.c.b16 %v572, %v571
        %v584 = vpack.c.b16 %v574, %v573
        %v585 = vpack.c.b16 %v576, %v575
        %v586 = vpack.c.b16 %v578, %v577
        %595 = vmatpush.bf16.msra.mxu0 %v586
        %596 = vmatpush.bf16.msra.mxu0 %v585
        %597 = vmatpush.bf16.msra.mxu0 %v584
        %598 = vmatpush.bf16.msra.mxu0 %v583
        %599 = vmatpush.bf16.msra.mxu0 %v582
        %600 = vmatpush.bf16.msra.mxu0 %v581
        %601 = vmatpush.bf16.msra.mxu0 %v580
        %602 = vmatpush.bf16.msra.mxu0 %v579
        %603 = vmatmul.bf16.gmra.mxu0 %v356
        %v604 = vpop.f32.mrf.mxu0
        %v605 = vadd.f32 %v527, %v604
        %v606 = vpop.f32.mrf.mxu0
        %607 = vdwg.mxu0
        %v608 = vmax.f32 %v605, 0.0
        %v609 = vpack.c.bf16 %v530, %v530
        %v610 = vpack.c.bf16 %v608, %v608
        %v612 = vunpack.c.l.b16 %v610
        %v613 = vpack.c.b16 %v612, %v612
        %v615 = vshrl.u32 %v613, 16
        %v617 = vrot.slane %v615, 7
        %v618 = vshll.u32 %v613, 16
        %v620 = vor.u32 %v617, %v618
        %v622 = vsel %vm369, 0, %v620
        %v623 = vld [vmem:[%s5] sm:$0xf]
        %v624 = vld [vmem:[%s5 + $0x4] sm:$0xf]
        %v625 = vld [vmem:[%s5 + $0x8] sm:$0xf]
        %v626 = vld [vmem:[%s5 + $0xc] sm:$0xf]
        %v627 = vld [vmem:[%s6] sm:$0xf]
        %v628 = vld [vmem:[%s6 + $0x4] sm:$0xf]
        %v629 = vld [vmem:[%s6 + $0x8] sm:$0xf]
        %v630 = vld [vmem:[%s6 + $0xc] sm:$0xf]
        %v635 = vunpack.c.l.b16 %v627
        %v636 = vunpack.c.l.b16 %v628
        %v637 = vunpack.c.l.b16 %v629
        %v638 = vunpack.c.l.b16 %v630
        %v639 = vpack.c.b16 %v636, %v635
        %v640 = vpack.c.b16 %v638, %v637
        %vm643 = vcmask 261120
        %v645 = vsel %vm643, %v609, 0
        %647 = vmatpush.bf16.msra.mxu0 0
        %648 = vmatpush.bf16.msra.mxu0 0
        %649 = vmatpush.bf16.msra.mxu0 0
        %650 = vmatpush.bf16.msra.mxu0 0
        %651 = vmatpush.bf16.msra.mxu0 0
        %652 = vmatpush.bf16.msra.mxu0 0
        %653 = vmatpush.bf16.msra.mxu0 %v640
        %654 = vmatpush.bf16.msra.mxu0 %v639
        %655 = vmatmul.bf16.gmra.mxu0 %v645
        %v656 = vpop.f32.mrf.mxu0
        %v657 = vadd.f32 0.0, %v656
        %v658 = vpop.f32.mrf.mxu0
        %659 = vdwg.mxu0
        %v664 = vunpack.c.l.b16 %v623
        %v665 = vunpack.c.l.b16 %v624
        %v666 = vunpack.c.l.b16 %v625
        %v667 = vunpack.c.l.b16 %v626
        %v668 = vpack.c.b16 %v665, %v664
        %v669 = vpack.c.b16 %v667, %v666
        %v673 = vsel %vm643, %v622, 0
        %675 = vmatpush.bf16.msra.mxu0 0
        %676 = vmatpush.bf16.msra.mxu0 0
        %677 = vmatpush.bf16.msra.mxu0 0
        %678 = vmatpush.bf16.msra.mxu0 0
        %679 = vmatpush.bf16.msra.mxu0 0
        %680 = vmatpush.bf16.msra.mxu0 0
        %681 = vmatpush.bf16.msra.mxu0 %v669
        %682 = vmatpush.bf16.msra.mxu0 %v668
        %683 = vmatmul.bf16.gmra.mxu0 %v673
        %v684 = vpop.f32.mrf.mxu0
        %v685 = vadd.f32 %v657, %v684
        %v686 = vpop.f32.mrf.mxu0
        %687 = vdwg.mxu0
        %v688 = vld [vmem:[%s7] sm:$0xf]
        %v689 = vld [vmem:[%s7 + $0x4] sm:$0xf]
        %v690 = vld [vmem:[%s7 + $0x8] sm:$0xf]
        %v691 = vld [vmem:[%s7 + $0xc] sm:$0xf]
        %v696 = vunpack.c.l.b16 %v688
        %v697 = vunpack.c.l.b16 %v689
        %v698 = vunpack.c.l.b16 %v690
        %v699 = vunpack.c.l.b16 %v691
        %v700 = vpack.c.b16 %v697, %v696
        %v701 = vpack.c.b16 %v699, %v698
        %v705 = vsel %vm643, %v610, 0
        %707 = vmatpush.bf16.msra.mxu0 0
        %708 = vmatpush.bf16.msra.mxu0 0
        %709 = vmatpush.bf16.msra.mxu0 0
        %710 = vmatpush.bf16.msra.mxu0 0
        %711 = vmatpush.bf16.msra.mxu0 0
        %712 = vmatpush.bf16.msra.mxu0 0
        %713 = vmatpush.bf16.msra.mxu0 %v701
        %714 = vmatpush.bf16.msra.mxu0 %v700
        %715 = vmatmul.bf16.gmra.mxu0 %v705
        %v716 = vpop.f32.mrf.mxu0
        %v717 = vadd.f32 0.0, %v716
        %v718 = vpop.f32.mrf.mxu0
        %719 = vdwg.mxu0
        %v720 = vadd.f32 %v685, %v717
        %v721 = vld [vmem:[%s8] sm:$0x1]
        %v723 = vperm.slane %v721, 0
        %v725 = vadd.f32 %v720, %v723
        %v726 = vmax.f32 %v725, 0.0
        %v727 = vpack.c.bf16 %v726, %v726
        %v728 = vld [vmem:[%s9] sm:$0xf]
        %v729 = vld [vmem:[%s9 + $0x4] sm:$0xf]
        %v730 = vld [vmem:[%s9 + $0x8] sm:$0xf]
        %v731 = vld [vmem:[%s9 + $0xc] sm:$0xf]
        %v736 = vunpack.c.l.b16 %v728
        %v737 = vunpack.c.l.b16 %v729
        %v738 = vunpack.c.l.b16 %v730
        %v739 = vunpack.c.l.b16 %v731
        %v740 = vpack.c.b16 %v737, %v736
        %v741 = vpack.c.b16 %v739, %v738
        %v745 = vsel %vm643, %v727, 0
        %747 = vmatpush.bf16.msra.mxu0 0
        %748 = vmatpush.bf16.msra.mxu0 0
        %749 = vmatpush.bf16.msra.mxu0 0
        %750 = vmatpush.bf16.msra.mxu0 0
        %751 = vmatpush.bf16.msra.mxu0 0
        %752 = vmatpush.bf16.msra.mxu0 0
        %753 = vmatpush.bf16.msra.mxu0 %v741
        %754 = vmatpush.bf16.msra.mxu0 %v740
        %755 = vmatmul.bf16.gmra.mxu0 %v745
        %v756 = vpop.f32.mrf.mxu0
        %v757 = vadd.f32 0.0, %v756
        %v758 = vpop.f32.mrf.mxu0
        %759 = vdwg.mxu0
        %760 = vst [vmem:[%s350] sm:$0xf] %v757
        %s761 = sand.u32 %s247, 1
        %s762 = scalar_lea.sflag [#allocation3], %s761
        %s763 = sand.u32 %s247, 1
        %s764 = smul.addr %s763, 4
        %s765 = scalar_lea.vmem [#allocation2], %s764
        // Predicated region
        $region61: #{conv_subsampler_forward.1} parent=59 // pred_check
          %p766 = pneg %p257
        $region62: #{conv_subsampler_forward.1} parent=59 // pred_check_branch
          %768 = sbr.rel (%p766) target = $region64
        $region63: #{conv_subsampler_forward.1} parent=59 // pred_region
          %770 = vsyncadd %s762, 0
          %s771 = smul.addr %s24, 4
          %s772 = scalar_lea.hbm %s10, %s771
          %s774 = sshll.u32 %s765, 4
          %s775 = int_to_ptr.vmem [resolvable:$true] %s774
          %s776 = sshll.u32 %s772, 4
          %s777 = int_to_ptr.hbm [resolvable:$true] %s776
          %779 = dma.vmem_to_hbm [thread:$0]  %s775, 64, %s777, %s762
        $region64: #{conv_subsampler_forward.1} parent=59 // pred_fallthru
          _
      $region60: #{conv_subsampler_forward.1} parent=5 // pred_fallthru
        _
      %p780 = scmp.le.s32.totalorder 2, %s19
      // Predicated region
      $region65: #{conv_subsampler_forward.1} parent=5 // pred_check
        %p781 = pneg %p780
      $region66: #{conv_subsampler_forward.1} parent=5 // pred_check_branch
        %783 = sbr.rel (%p781) target = $region68
      $region67: #{conv_subsampler_forward.1} parent=5 // pred_region
        %s784 = ssub.s32 %s19, 2
        // Predicated region
        $region69: #{conv_subsampler_forward.1} parent=67 // pred_check
          %p785 = pneg %p263
        $region70: #{conv_subsampler_forward.1} parent=67 // pred_check_branch
          %787 = sbr.rel (%p785) target = $region72
        $region71: #{conv_subsampler_forward.1} parent=67 // pred_region
          %s788 = sand.u32 %s248, 1
          %s789 = scalar_lea.sflag [#allocation3], %s788
          %s790 = sand.u32 %s248, 1
          %s791 = smul.addr %s790, 4
          %s792 = scalar_lea.vmem [#allocation2], %s791
          %794 = dma.done %s789, 64
        $region72: #{conv_subsampler_forward.1} parent=67 // pred_fallthru
          _
      $region68: #{conv_subsampler_forward.1} parent=5 // pred_fallthru
        _
    $region6: #{conv_subsampler_forward.1} parent=1 // loop_footer
      %s23 = sadd.s32 1, %s19
    $region7: #{conv_subsampler_forward.1} parent=1 // loop_footer_branch
      %18 = sbr.rel target = $region3
    $region8: #{conv_subsampler_forward.1} parent=1 // loop_exit
      _
    %795 = vsyncpa [#allocation3], 1
    %s796 = scalar_lea.sflag [#allocation3], 1
    %797 = vsyncpa %s796, 1

</llo_original>
